<compile_context>
chip_gen: v7x
topology: tpu7x:2x2x1
jax: 0.10.0
libtpu: 0.0.40
codegen_flags: <defaults>
</compile_context>

<pallas_src>
import numpy as np
import jax
import jax.numpy as jnp
from jax.experimental import pallas as pl
from jax.experimental.pallas import tpu as pltpu

# pywt Wavelet('db2') decomposition filters
DB2_DEC_LO = np.array([-0.12940952255092145, 0.22414386804185735,
                        0.836516303737469,   0.48296291314469025], dtype=np.float64)
DB2_DEC_HI = np.array([-0.48296291314469025, 0.836516303737469,
                       -0.22414386804185735, -0.12940952255092145], dtype=np.float64)


def periodized_analysis_matrices(n_full):
    """(N/2, N) low/high-pass analysis matrices of the periodized db2 DWT (float64).
    a[o] = sum_j dec_lo[j] * x[(2o + F//2 - j) mod N]  (pywt 'periodization' alignment).
    Orthogonal transform -> synthesis = transpose (exact inverse)."""
    F = DB2_DEC_LO.shape[0]
    Lm = np.zeros((n_full // 2, n_full), dtype=np.float64)
    Hm = np.zeros((n_full // 2, n_full), dtype=np.float64)
    for o in range(n_full // 2):
        for j in range(F):
            idx = (2 * o + F // 2 - j) % n_full
            Lm[o, idx] += DB2_DEC_LO[j]
            Hm[o, idx] += DB2_DEC_HI[j]
    return Lm, Hm


def build_fused_operands(params, L):
    """One-time host-side parameter prep (all products in float64, cast to f32 at the end).

    KW1_lo : (L*L,   N*H)  rows of K @ kron(I_N, W1) acting on the flattened cA channel.
    KW1_hi : (3*L*L, N*H)  rows acting on the flattened (cH, cV, cD) channels.
    b1f    : (1, N*H)      per-image-row bias, tiled.
    W2k    : (N*H, N*N)    kron(I_N, W2)  -- second linear lifted to flat block-diagonal form.
    b2f    : (1, N*N)      tiled bias.
    """
    N = 2 * L
    LL = L * L
    Lm64, Hm64 = periodized_analysis_matrices(N)

    # y[b,i,j] = sum_{o,p} Lm[o,i] aa[o,p] Lm[p,j] + Hm[o,i] da[o,p] Lm[p,j]
    #          + Lm[o,i] ad[o,p] Hm[p,j] + Hm[o,i] dd[o,p] Hm[p,j]
    def op(A, Bm):
        return np.einsum('oi,pj->opij', A, Bm).reshape(LL, N * N)

    K64 = np.concatenate(
        [op(Lm64, Lm64), op(Hm64, Lm64), op(Lm64, Hm64), op(Hm64, Hm64)],
        axis=0)                                                      # (4*L*L, N*N) float64

    w1 = np.asarray(params["w1"], dtype=np.float64)
    b1 = np.asarray(params["b1"], dtype=np.float64)
    w2 = np.asarray(params["w2"], dtype=np.float64)
    b2 = np.asarray(params["b2"], dtype=np.float64)
    eye = np.eye(N, dtype=np.float64)

    KW1 = K64 @ np.kron(eye, w1)                                     # (4*L*L, N*H) float64 fusion
    W2k = np.kron(eye, w2)                                           # (N*H, N*N) block-diagonal
    b1f = np.tile(b1, N)[None, :]                                    # (1, N*H)
    b2f = np.tile(b2, N)[None, :]                                    # (1, N*N)

    return dict(
        KW1_lo=jnp.asarray(KW1[:LL].astype(np.float32)),
        KW1_hi=jnp.asarray(KW1[LL:].astype(np.float32)),
        b1f=jnp.asarray(b1f.astype(np.float32)),
        W2k=jnp.asarray(W2k.astype(np.float32)),
        b2f=jnp.asarray(b2f.astype(np.float32)),
    )


def conditional_kernel(low_ref, high_ref, kw1_lo_ref, kw1_hi_ref, b1_ref, w2_ref, b2_ref, o_ref):
    # low_ref: (Bt, L*L), high_ref: (Bt, 3*L*L).  Two lane-dense MXU matmuls, batch folded into M.
    h = (jnp.dot(low_ref[...], kw1_lo_ref[...], preferred_element_type=jnp.float32)
         + jnp.dot(high_ref[...], kw1_hi_ref[...], preferred_element_type=jnp.float32)
         + b1_ref[...])                                               # (Bt, N*H)  = IDWT + Linear1
    h = jnp.maximum(h, 0.0)                                           # ReLU
    out = jnp.dot(h, w2_ref[...], preferred_element_type=jnp.float32) + b2_ref[...]   # (Bt, N*N)
    o_ref[...] = out.astype(o_ref.dtype)


def _pick_block_b(bp):
    """Batch block: fill the MXU M rows (<=256), multiple of 8, grid>=2 when batch is large
    enough (v7x has 2 TensorCores; "parallel" grid axis shards across them)."""
    if bp <= 256:
        if bp >= 256 and (bp // 2) % 8 == 0:
            return bp // 2
        return bp
    for bt in range(256, 7, -8):
        if bp % bt == 0:
            return bt
    return 8


def conditional_module(high, low, fused, *, block_b=None):
    """high: (B, 3, L, L), low: (B, L, L) -> (B, 2L, 2L)."""
    B, c3, L, L2 = high.shape
    assert c3 == 3 and L == L2 and low.shape == (B, L, L)
    N = 2 * L
    LL = L * L
    NN = N * N

    KW1_lo, KW1_hi = fused["KW1_lo"], fused["KW1_hi"]
    b1f, W2k, b2f = fused["b1f"], fused["W2k"], fused["b2f"]
    NH = KW1_lo.shape[1]

    # Flatten (no concatenate): low/high become dense (B, LL) / (B, 3*LL) slabs and the batch
    # folds straight into the matmul M dimension.  Pad batch to a multiple of 8 (sublane rule,
    # avoids masked partial-sublane stores at tiny M); padded rows are sliced off at the end.
    low_f = low.reshape(B, LL).astype(jnp.float32)
    high_f = high.reshape(B, 3 * LL).astype(jnp.float32)
    Bp = ((B + 7) // 8) * 8
    if Bp != B:
        low_f = jnp.pad(low_f, ((0, Bp - B), (0, 0)))
        high_f = jnp.pad(high_f, ((0, Bp - B), (0, 0)))

    Bt = _pick_block_b(Bp) if block_b is None else block_b
    assert Bp % Bt == 0 and Bt % 8 == 0
    grid = (Bp // Bt,)

    # Per-generation VMEM guard + scoped-limit sizing (weights single-buffered, I/O blocks x2).
    weight_bytes = 4 * (KW1_lo.size + KW1_hi.size + W2k.size + b1f.size + b2f.size)
    io_block_bytes = 4 * (Bt * 4 * LL + Bt * NN)
    needed = weight_bytes + 2 * io_block_bytes + (1 << 20)            # + scratch/layout slack
    try:
        vmem_phys = int(pltpu.get_tpu_info().vmem_capacity_bytes)
    except Exception:
        vmem_phys = 64 << 20                                          # conservative: v7x per-TC
    budget = int(0.9 * vmem_phys)
    assert needed <= budget, (
        f"fused-operator footprint {needed / 2**20:.1f} MiB exceeds VMEM budget "
        f"{budget / 2**20:.1f} MiB on this generation; reduce L or restructure the second "
        f"layer as a batched (Bt,N,H)x(H,N) contraction instead of kron(I,W2)")
    vmem_limit = int(min(budget, max(needed, 32 << 20)))

    # Advisory cost so XLA can overlap surrounding ops with the kernel.
    flops = 2 * Bp * (4 * LL * NH + NH * NN)
    bytes_accessed = 4 * (Bp * 4 * LL + Bp * NN) + weight_bytes
    cost = pl.CostEstimate(flops=flops, transcendentals=0, bytes_accessed=bytes_accessed)

    # Grid-invariant weights: single-buffered (constant index_map, nothing to prefetch).
    weight_spec = lambda shape: pl.BlockSpec(shape, lambda b: (0, 0),
                                             pipeline_mode=pl.Buffered(1))

    out_flat = pl.pallas_call(
        conditional_kernel,
        out_shape=jax.ShapeDtypeStruct((Bp, NN), jnp.float32),   # lane-dense output (last dim >= 256)
        grid=grid,
        in_specs=[
            pl.BlockSpec((Bt, LL), lambda b: (b, 0)),            # flattened cA
            pl.BlockSpec((Bt, 3 * LL), lambda b: (b, 0)),        # flattened cH,cV,cD
            weight_spec(KW1_lo.shape),                           # fused IDWT+Linear1, low rows
            weight_spec(KW1_hi.shape),                           # fused IDWT+Linear1, high rows
            weight_spec((1, NH)),                                # b1 (tiled)
            weight_spec(W2k.shape),                              # kron(I, W2)
            weight_spec((1, NN)),                                # b2 (tiled)
        ],
        out_specs=pl.BlockSpec((Bt, NN), lambda b: (b, 0)),
        compiler_params=pltpu.CompilerParams(
            dimension_semantics=("parallel",),
            vmem_limit_bytes=vmem_limit),
        cost_estimate=cost,
    )(low_f, high_f, KW1_lo, KW1_hi, b1f, W2k, b2f)

    return out_flat[:B].reshape(B, N, N)


def reference(high, low, params):
    """Pure-JAX reference of the original (unfused) forward pass: idwt2 then per-row MLP."""
    x = jnp.concatenate([low[:, None, :, :], high], axis=1).astype(jnp.float32)
    Lm, Hm = params["Lm"], params["Hm"]
    aa, da, ad, dd = x[:, 0], x[:, 1], x[:, 2], x[:, 3]
    y = (jnp.einsum('oi,bop,pj->bij', Lm, aa, Lm)
         + jnp.einsum('oi,bop,pj->bij', Hm, da, Lm)
         + jnp.einsum('oi,bop,pj->bij', Lm, ad, Hm)
         + jnp.einsum('oi,bop,pj->bij', Hm, dd, Hm))
    h = jnp.maximum(jnp.einsum('bij,jk->bik', y, params["w1"]) + params["b1"], 0.0)
    return jnp.einsum('bik,kj->bij', h, params["w2"]) + params["b2"]


if __name__ == "__main__":
    B, L, hidden = 2, 8, 32          # coefficients (B, *, 8, 8) -> reconstructed image 16x16
    N = 2 * L

    key = jax.random.PRNGKey(0)
    k_high, k_low, k_w1, k_b1, k_w2, k_b2 = jax.random.split(key, 6)
    high = jax.random.normal(k_high, (B, 3, L, L), dtype=jnp.float32)
    low = jax.random.normal(k_low, (B, L, L), dtype=jnp.float32)

    Lm64, Hm64 = periodized_analysis_matrices(N)
    params = dict(
        Lm=jnp.asarray(Lm64.astype(np.float32)),
        Hm=jnp.asarray(Hm64.astype(np.float32)),
        w1=0.1 * jax.random.normal(k_w1, (N, hidden), dtype=jnp.float32),
        b1=0.1 * jax.random.normal(k_b1, (hidden,), dtype=jnp.float32),
        w2=0.1 * jax.random.normal(k_w2, (hidden, N), dtype=jnp.float32),
        b2=0.1 * jax.random.normal(k_b2, (N,), dtype=jnp.float32),
    )

    fused = build_fused_operands(params, L)      # one-time host-side parameter prep (float64)
    out = conditional_module(high, low, fused)
    out = jax.block_until_ready(out)

    ref = reference(high, low, params)
    np.testing.assert_allclose(np.asarray(out), np.asarray(ref), rtol=2e-4, atol=2e-4)
    print("KERNEL_OK")
</pallas_src>

<mosaic_0001>
module attributes {stable_mosaic.version = 11 : i64} {
  func.func @conditional_kernel(%arg0: i32, %arg1: memref<8x64xf32, #tpu.memory_space<vmem>>, %arg2: memref<8x192xf32, #tpu.memory_space<vmem>>, %arg3: memref<64x512xf32, #tpu.memory_space<vmem>>, %arg4: memref<192x512xf32, #tpu.memory_space<vmem>>, %arg5: memref<1x512xf32, #tpu.memory_space<vmem>>, %arg6: memref<512x256xf32, #tpu.memory_space<vmem>>, %arg7: memref<1x256xf32, #tpu.memory_space<vmem>>, %arg8: memref<8x256xf32, #tpu.memory_space<vmem>>) attributes {dimension_semantics = [#tpu.dimension_semantics<parallel>], iteration_bounds = array<i64: 1>, scalar_prefetch = 0 : i64, scratch_operands = 0 : i64, tpu.core_type = #tpu.core_type<tc>, window_params = [{transform_indices = @transform_0, window_bounds = array<i64: 8, 64>}, {transform_indices = @transform_1, window_bounds = array<i64: 8, 192>}, {pipeline_mode = #tpu.pipeline_mode<synchronous>, transform_indices = @transform_2, window_bounds = array<i64: 64, 512>}, {pipeline_mode = #tpu.pipeline_mode<synchronous>, transform_indices = @transform_3, window_bounds = array<i64: 192, 512>}, {pipeline_mode = #tpu.pipeline_mode<synchronous>, transform_indices = @transform_4, window_bounds = array<i64: 1, 512>}, {pipeline_mode = #tpu.pipeline_mode<synchronous>, transform_indices = @transform_5, window_bounds = array<i64: 512, 256>}, {pipeline_mode = #tpu.pipeline_mode<synchronous>, transform_indices = @transform_6, window_bounds = array<i64: 1, 256>}, {transform_indices = @transform_7, window_bounds = array<i64: 8, 256>}]} {
    %c0 = arith.constant 0 : index
    %c0_0 = arith.constant 0 : index
    %0 = vector.load %arg1[%c0, %c0_0] : memref<8x64xf32, #tpu.memory_space<vmem>>, vector<8x64xf32>
    %c0_1 = arith.constant 0 : index
    %c0_2 = arith.constant 0 : index
    %1 = vector.load %arg3[%c0_1, %c0_2] : memref<64x512xf32, #tpu.memory_space<vmem>>, vector<64x512xf32>
    %cst = arith.constant dense<0.000000e+00> : vector<8x512xf32>
    %2 = tpu.matmul %0, %1, %cst {dimension_numbers = #tpu.dot_dimension_numbers<[1], [0], [0], [1], [0, 0, 1, 1], [], []>} : vector<8x64xf32>, vector<64x512xf32>, vector<8x512xf32> -> vector<8x512xf32>
    %c0_3 = arith.constant 0 : index
    %c0_4 = arith.constant 0 : index
    %3 = vector.load %arg2[%c0_3, %c0_4] : memref<8x192xf32, #tpu.memory_space<vmem>>, vector<8x192xf32>
    %c0_5 = arith.constant 0 : index
    %c0_6 = arith.constant 0 : index
    %4 = vector.load %arg4[%c0_5, %c0_6] : memref<192x512xf32, #tpu.memory_space<vmem>>, vector<192x512xf32>
    %cst_7 = arith.constant dense<0.000000e+00> : vector<8x512xf32>
    %5 = tpu.matmul %3, %4, %cst_7 {dimension_numbers = #tpu.dot_dimension_numbers<[1], [0], [0], [1], [0, 0, 1, 1], [], []>} : vector<8x192xf32>, vector<192x512xf32>, vector<8x512xf32> -> vector<8x512xf32>
    %6 = arith.addf %2, %5 : vector<8x512xf32>
    %c0_8 = arith.constant 0 : index
    %c0_9 = arith.constant 0 : index
    %7 = vector.load %arg5[%c0_8, %c0_9] : memref<1x512xf32, #tpu.memory_space<vmem>>, vector<1x512xf32>
    %8 = vector.broadcast %7 : vector<1x512xf32> to vector<8x512xf32>
    %9 = arith.addf %6, %8 : vector<8x512xf32>
    %cst_10 = arith.constant 0.000000e+00 : f32
    %10 = vector.broadcast %cst_10 : f32 to vector<8x512xf32>
    %11 = arith.maximumf %9, %10 : vector<8x512xf32>
    %c0_11 = arith.constant 0 : index
    %c0_12 = arith.constant 0 : index
    %12 = vector.load %arg6[%c0_11, %c0_12] : memref<512x256xf32, #tpu.memory_space<vmem>>, vector<512x256xf32>
    %cst_13 = arith.constant dense<0.000000e+00> : vector<8x256xf32>
    %13 = tpu.matmul %11, %12, %cst_13 {dimension_numbers = #tpu.dot_dimension_numbers<[1], [0], [0], [1], [0, 0, 1, 1], [], []>} : vector<8x512xf32>, vector<512x256xf32>, vector<8x256xf32> -> vector<8x256xf32>
    %c0_14 = arith.constant 0 : index
    %c0_15 = arith.constant 0 : index
    %14 = vector.load %arg7[%c0_14, %c0_15] : memref<1x256xf32, #tpu.memory_space<vmem>>, vector<1x256xf32>
    %15 = vector.broadcast %14 : vector<1x256xf32> to vector<8x256xf32>
    %16 = arith.addf %13, %15 : vector<8x256xf32>
    %c0_16 = arith.constant 0 : index
    %c0_17 = arith.constant 0 : index
    %17 = vector.load %arg8[%c0_16, %c0_17] : memref<8x256xf32, #tpu.memory_space<vmem>>, vector<8x256xf32>
    tpu.vector_store %arg8[%c0_16, %c0_17], %16 {strides = array<i32>} : memref<8x256xf32, #tpu.memory_space<vmem>>, vector<8x256xf32>,
    return
  }
  func.func @transform_0(%arg0: i32) -> (i32, i32) {
    %c0_i32 = arith.constant 0 : i32
    %c0_i32_0 = arith.constant 0 : i32
    return %arg0, %c0_i32 : i32, i32
  }
  func.func @transform_1(%arg0: i32) -> (i32, i32) {
    %c0_i32 = arith.constant 0 : i32
    %c0_i32_0 = arith.constant 0 : i32
    return %arg0, %c0_i32 : i32, i32
  }
  func.func @transform_2(%arg0: i32) -> (i32, i32) {
    %c0_i32 = arith.constant 0 : i32
    %c0_i32_0 = arith.constant 0 : i32
    %c0_i32_1 = arith.constant 0 : i32
    return %c0_i32, %c0_i32_0 : i32, i32
  }
  func.func @transform_3(%arg0: i32) -> (i32, i32) {
    %c0_i32 = arith.constant 0 : i32
    %c0_i32_0 = arith.constant 0 : i32
    %c0_i32_1 = arith.constant 0 : i32
    return %c0_i32, %c0_i32_0 : i32, i32
  }
  func.func @transform_4(%arg0: i32) -> (i32, i32) {
    %c0_i32 = arith.constant 0 : i32
    %c0_i32_0 = arith.constant 0 : i32
    %c0_i32_1 = arith.constant 0 : i32
    return %c0_i32, %c0_i32_0 : i32, i32
  }
  func.func @transform_5(%arg0: i32) -> (i32, i32) {
    %c0_i32 = arith.constant 0 : i32
    %c0_i32_0 = arith.constant 0 : i32
    %c0_i32_1 = arith.constant 0 : i32
    return %c0_i32, %c0_i32_0 : i32, i32
  }
  func.func @transform_6(%arg0: i32) -> (i32, i32) {
    %c0_i32 = arith.constant 0 : i32
    %c0_i32_0 = arith.constant 0 : i32
    %c0_i32_1 = arith.constant 0 : i32
    return %c0_i32, %c0_i32_0 : i32, i32
  }
  func.func @transform_7(%arg0: i32) -> (i32, i32) {
    %c0_i32 = arith.constant 0 : i32
    %c0_i32_0 = arith.constant 0 : i32
    return %arg0, %c0_i32 : i32, i32
  }
}

</mosaic_0001>

<llo_original>
// kernel: tpu_custom_call.1
$region0: #{tpu_custom_call.1}
  #allocation0 [shape = 'u32[]', space=smem, size = 0x4, offset = 0x4, fixed_abs, tag = 'smem constant byte address 0x4 - core index']
  #allocation1 [shape = 'u32[144,128]{1,0:T(1,128)}', space=vmem, size = 0x12000, scoped, tag = 'internal scratch']
  %s0 = inlined_call_operand.hbm [shape: f32[8,64], index: 0, kind: input, shape index: {}]
  %s1 = inlined_call_operand.hbm [shape: f32[8,192], index: 1, kind: input, shape index: {}]
  %s2 = inlined_call_operand.hbm [shape: f32[64,512], index: 2, kind: input, shape index: {}]
  %s3 = inlined_call_operand.hbm [shape: f32[192,512], index: 3, kind: input, shape index: {}]
  %s4 = inlined_call_operand.vmem [shape: f32[1,512], index: 4, kind: input, shape index: {}]
  %s5 = inlined_call_operand.hbm [shape: f32[512,256], index: 5, kind: input, shape index: {}]
  %s6 = inlined_call_operand.vmem [shape: f32[1,256], index: 6, kind: input, shape index: {}]
  %s7 = inlined_call_operand.hbm [shape: f32[8,256], index: 7, kind: output, shape index: {}]
  %s8 = sld [smem:[#allocation0]]
  $region58: #{tpu_custom_call.1} parent=0
    _
  %s10 = ssub.s32 1, %s8
  %s11 = scalar_select 0, %s10, %s8
  $region1: #{tpu_custom_call.1} parent=0
    #allocation2 [shape = 'u8[4096]{0}', space=vmem, size = 0x1000, scoped, tag = 'input window, operand 0, single buffered']
    #allocation3 [shape = 's32[1]{0}', space=sflag, size = 0x4, scoped, tag = 'scoped memory for tpu_custom_call.1']
    #allocation4 [shape = 's32[1]{0}', space=sflag, size = 0x4, scoped, tag = 'scoped memory for tpu_custom_call.1']
    #allocation5 [shape = 'u8[8192]{0}', space=vmem, size = 0x2000, scoped, tag = 'input window, operand 1, single buffered']
    #allocation6 [shape = 's32[1]{0}', space=sflag, size = 0x4, scoped, tag = 'scoped memory for tpu_custom_call.1']
    #allocation7 [shape = 'u8[131072]{0}', space=vmem, size = 0x20000, scoped, tag = 'input window, operand 2, single buffered']
    #allocation8 [shape = 'u8[393216]{0}', space=vmem, size = 0x60000, scoped, tag = 'input window, operand 3, single buffered']
    #allocation9 [shape = 's32[1]{0}', space=sflag, size = 0x4, scoped, tag = 'scoped memory for tpu_custom_call.1']
    #allocation10 [shape = 'u8[524288]{0}', space=vmem, size = 0x80000, scoped, tag = 'input window, operand 5, single buffered']
    #allocation11 [shape = 'u8[8192]{0}', space=vmem, size = 0x2000, scoped, tag = 'output window, operand 0, single buffered']
    %12 = vsyncpa [#allocation3], 0
    %13 = vsyncpa [#allocation6], 0
    %14 = vsyncpa [#allocation9], 0
    %15 = vsyncpa [#allocation4], 0
    // Predicated region
    $region2: #{tpu_custom_call.1} parent=1 // pred_check
      _
    $region3: #{tpu_custom_call.1} parent=1 // pred_check_branch
      %17 = sbr.rel (0) target = $region5
    $region4: #{tpu_custom_call.1} parent=1 // pred_region
      %s19 = ssub.s32 128, 128
      %20 = vsyncadd [#allocation3], %s19
      %s22 = sshll.u32 [#allocation2], 4
      %s23 = int_to_ptr.vmem [resolvable:$true] %s22
      %25 = dma.hbm_to_vmem [thread:$0]  %s0, 128, %s23, [#allocation3]
    $region5: #{tpu_custom_call.1} parent=1 // pred_fallthru
      _
    // Predicated region
    $region6: #{tpu_custom_call.1} parent=1 // pred_check
      _
    $region7: #{tpu_custom_call.1} parent=1 // pred_check_branch
      %27 = sbr.rel (0) target = $region9
    $region8: #{tpu_custom_call.1} parent=1 // pred_region
      %s29 = ssub.s32 256, 256
      %30 = vsyncadd [#allocation6], %s29
      %s32 = sshll.u32 [#allocation5], 4
      %s33 = int_to_ptr.vmem [resolvable:$true] %s32
      %35 = dma.hbm_to_vmem [thread:$0]  %s1, 256, %s33, [#allocation6]
    $region9: #{tpu_custom_call.1} parent=1 // pred_fallthru
      _
    // Predicated region
    $region10: #{tpu_custom_call.1} parent=1 // pred_check
      _
    $region11: #{tpu_custom_call.1} parent=1 // pred_check_branch
      %37 = sbr.rel (0) target = $region13
    $region12: #{tpu_custom_call.1} parent=1 // pred_region
      %s39 = ssub.s32 4096, 4096
      %40 = vsyncadd [#allocation6], %s39
      %s41 = sshll.u32 [#allocation7], 4
      %s42 = int_to_ptr.vmem [resolvable:$true] %s41
      %47 = dma.hbm_to_vmem [thread:$0]  %s2, 4096, %s42, [#allocation6], 512, 512, 32
    $region13: #{tpu_custom_call.1} parent=1 // pred_fallthru
      _
    // Predicated region
    $region14: #{tpu_custom_call.1} parent=1 // pred_check
      _
    $region15: #{tpu_custom_call.1} parent=1 // pred_check_branch
      %49 = sbr.rel (0) target = $region17
    $region16: #{tpu_custom_call.1} parent=1 // pred_region
      %s51 = ssub.s32 12288, 12288
      %52 = vsyncadd [#allocation9], %s51
      %s53 = sshll.u32 [#allocation8], 4
      %s54 = int_to_ptr.vmem [resolvable:$true] %s53
      %59 = dma.hbm_to_vmem [thread:$0]  %s3, 12288, %s54, [#allocation9], 512, 512, 32
    $region17: #{tpu_custom_call.1} parent=1 // pred_fallthru
      _
    // Predicated region
    $region18: #{tpu_custom_call.1} parent=1 // pred_check
      _
    $region19: #{tpu_custom_call.1} parent=1 // pred_check_branch
      %61 = sbr.rel (0) target = $region21
    $region20: #{tpu_custom_call.1} parent=1 // pred_region
      _
    $region21: #{tpu_custom_call.1} parent=1 // pred_fallthru
      _
    // Predicated region
    $region22: #{tpu_custom_call.1} parent=1 // pred_check
      _
    $region23: #{tpu_custom_call.1} parent=1 // pred_check_branch
      %63 = sbr.rel (0) target = $region25
    $region24: #{tpu_custom_call.1} parent=1 // pred_region
      %s65 = ssub.s32 16384, 16384
      %66 = vsyncadd [#allocation9], %s65
      %s67 = sshll.u32 [#allocation10], 4
      %s68 = int_to_ptr.vmem [resolvable:$true] %s67
      %73 = dma.hbm_to_vmem [thread:$0]  %s5, 16384, %s68, [#allocation9], 256, 256, 16
    $region25: #{tpu_custom_call.1} parent=1 // pred_fallthru
      _
    // Predicated region
    $region26: #{tpu_custom_call.1} parent=1 // pred_check
      _
    $region27: #{tpu_custom_call.1} parent=1 // pred_check_branch
      %75 = sbr.rel (0) target = $region29
    $region28: #{tpu_custom_call.1} parent=1 // pred_region
      _
    $region29: #{tpu_custom_call.1} parent=1 // pred_fallthru
      _
    // Predicated region
    $region30: #{tpu_custom_call.1} parent=1 // pred_check
      _
    $region31: #{tpu_custom_call.1} parent=1 // pred_check_branch
      %77 = sbr.rel (0) target = $region33
    $region32: #{tpu_custom_call.1} parent=1 // pred_region
      %78 = dma.done [#allocation3], 128
    $region33: #{tpu_custom_call.1} parent=1 // pred_fallthru
      _
    // Predicated region
    $region34: #{tpu_custom_call.1} parent=1 // pred_check
      _
    $region35: #{tpu_custom_call.1} parent=1 // pred_check_branch
      %80 = sbr.rel (0) target = $region37
    $region36: #{tpu_custom_call.1} parent=1 // pred_region
      %81 = dma.done [#allocation6], 256
    $region37: #{tpu_custom_call.1} parent=1 // pred_fallthru
      _
    // Predicated region
    $region38: #{tpu_custom_call.1} parent=1 // pred_check
      _
    $region39: #{tpu_custom_call.1} parent=1 // pred_check_branch
      %83 = sbr.rel (0) target = $region41
    $region40: #{tpu_custom_call.1} parent=1 // pred_region
      %84 = dma.done [#allocation6], 4096
    $region41: #{tpu_custom_call.1} parent=1 // pred_fallthru
      _
    // Predicated region
    $region42: #{tpu_custom_call.1} parent=1 // pred_check
      _
    $region43: #{tpu_custom_call.1} parent=1 // pred_check_branch
      %86 = sbr.rel (0) target = $region45
    $region44: #{tpu_custom_call.1} parent=1 // pred_region
      %87 = dma.done [#allocation9], 12288
    $region45: #{tpu_custom_call.1} parent=1 // pred_fallthru
      _
    // Predicated region
    $region46: #{tpu_custom_call.1} parent=1 // pred_check
      _
    $region47: #{tpu_custom_call.1} parent=1 // pred_check_branch
      %89 = sbr.rel (0) target = $region49
    $region48: #{tpu_custom_call.1} parent=1 // pred_region
      %90 = dma.done [#allocation9], 16384
    $region49: #{tpu_custom_call.1} parent=1 // pred_fallthru
      _
    %v91 = vld [vmem:[#allocation2] sm:$0xff]
    %v92 = vld [vmem:[#allocation7] sm:$0xff]
    %v93 = vld [vmem:[#allocation7 + $0x8] sm:$0xff]
    %v94 = vld [vmem:[#allocation7 + $0x10] sm:$0xff]
    %v95 = vld [vmem:[#allocation7 + $0x18] sm:$0xff]
    %v96 = vld [vmem:[#allocation7 + $0x20] sm:$0xff]
    %v97 = vld [vmem:[#allocation7 + $0x28] sm:$0xff]
    %v98 = vld [vmem:[#allocation7 + $0x30] sm:$0xff]
    %v99 = vld [vmem:[#allocation7 + $0x38] sm:$0xff]
    %v100 = vld [vmem:[#allocation7 + $0x40] sm:$0xff]
    %v101 = vld [vmem:[#allocation7 + $0x48] sm:$0xff]
    %v102 = vld [vmem:[#allocation7 + $0x50] sm:$0xff]
    %v103 = vld [vmem:[#allocation7 + $0x58] sm:$0xff]
    %v104 = vld [vmem:[#allocation7 + $0x60] sm:$0xff]
    %v105 = vld [vmem:[#allocation7 + $0x68] sm:$0xff]
    %v106 = vld [vmem:[#allocation7 + $0x70] sm:$0xff]
    %v107 = vld [vmem:[#allocation7 + $0x78] sm:$0xff]
    %v108 = vld [vmem:[#allocation7 + $0x80] sm:$0xff]
    %v109 = vld [vmem:[#allocation7 + $0x88] sm:$0xff]
    %v110 = vld [vmem:[#allocation7 + $0x90] sm:$0xff]
    %v111 = vld [vmem:[#allocation7 + $0x98] sm:$0xff]
    %v112 = vld [vmem:[#allocation7 + $0xa0] sm:$0xff]
    %v113 = vld [vmem:[#allocation7 + $0xa8] sm:$0xff]
    %v114 = vld [vmem:[#allocation7 + $0xb0] sm:$0xff]
    %v115 = vld [vmem:[#allocation7 + $0xb8] sm:$0xff]
    %v116 = vld [vmem:[#allocation7 + $0xc0] sm:$0xff]
    %v117 = vld [vmem:[#allocation7 + $0xc8] sm:$0xff]
    %v118 = vld [vmem:[#allocation7 + $0xd0] sm:$0xff]
    %v119 = vld [vmem:[#allocation7 + $0xd8] sm:$0xff]
    %v120 = vld [vmem:[#allocation7 + $0xe0] sm:$0xff]
    %v121 = vld [vmem:[#allocation7 + $0xe8] sm:$0xff]
    %v122 = vld [vmem:[#allocation7 + $0xf0] sm:$0xff]
    %v123 = vld [vmem:[#allocation7 + $0xf8] sm:$0xff]
    %v124 = vld [vmem:[#allocation5] sm:$0xff]
    %v125 = vld [vmem:[#allocation5 + $0x8] sm:$0xff]
    %v126 = vld [vmem:[#allocation8] sm:$0xff]
    %v127 = vld [vmem:[#allocation8 + $0x8] sm:$0xff]
    %v128 = vld [vmem:[#allocation8 + $0x10] sm:$0xff]
    %v129 = vld [vmem:[#allocation8 + $0x18] sm:$0xff]
    %v130 = vld [vmem:[#allocation8 + $0x20] sm:$0xff]
    %v131 = vld [vmem:[#allocation8 + $0x28] sm:$0xff]
    %v132 = vld [vmem:[#allocation8 + $0x30] sm:$0xff]
    %v133 = vld [vmem:[#allocation8 + $0x38] sm:$0xff]
    %v134 = vld [vmem:[#allocation8 + $0x40] sm:$0xff]
    %v135 = vld [vmem:[#allocation8 + $0x48] sm:$0xff]
    %v136 = vld [vmem:[#allocation8 + $0x50] sm:$0xff]
    %v137 = vld [vmem:[#allocation8 + $0x58] sm:$0xff]
    %v138 = vld [vmem:[#allocation8 + $0x60] sm:$0xff]
    %v139 = vld [vmem:[#allocation8 + $0x68] sm:$0xff]
    %v140 = vld [vmem:[#allocation8 + $0x70] sm:$0xff]
    %v141 = vld [vmem:[#allocation8 + $0x78] sm:$0xff]
    %v142 = vld [vmem:[#allocation8 + $0x80] sm:$0xff]
    %v143 = vld [vmem:[#allocation8 + $0x88] sm:$0xff]
    %v144 = vld [vmem:[#allocation8 + $0x90] sm:$0xff]
    %v145 = vld [vmem:[#allocation8 + $0x98] sm:$0xff]
    %v146 = vld [vmem:[#allocation8 + $0xa0] sm:$0xff]
    %v147 = vld [vmem:[#allocation8 + $0xa8] sm:$0xff]
    %v148 = vld [vmem:[#allocation8 + $0xb0] sm:$0xff]
    %v149 = vld [vmem:[#allocation8 + $0xb8] sm:$0xff]
    %v150 = vld [vmem:[#allocation8 + $0xc0] sm:$0xff]
    %v151 = vld [vmem:[#allocation8 + $0xc8] sm:$0xff]
    %v152 = vld [vmem:[#allocation8 + $0xd0] sm:$0xff]
    %v153 = vld [vmem:[#allocation8 + $0xd8] sm:$0xff]
    %v154 = vld [vmem:[#allocation8 + $0xe0] sm:$0xff]
    %v155 = vld [vmem:[#allocation8 + $0xe8] sm:$0xff]
    %v156 = vld [vmem:[#allocation8 + $0xf0] sm:$0xff]
    %v157 = vld [vmem:[#allocation8 + $0xf8] sm:$0xff]
    %v158 = vld [vmem:[#allocation8 + $0x100] sm:$0xff]
    %v159 = vld [vmem:[#allocation8 + $0x108] sm:$0xff]
    %v160 = vld [vmem:[#allocation8 + $0x110] sm:$0xff]
    %v161 = vld [vmem:[#allocation8 + $0x118] sm:$0xff]
    %v162 = vld [vmem:[#allocation8 + $0x120] sm:$0xff]
    %v163 = vld [vmem:[#allocation8 + $0x128] sm:$0xff]
    %v164 = vld [vmem:[#allocation8 + $0x130] sm:$0xff]
    %v165 = vld [vmem:[#allocation8 + $0x138] sm:$0xff]
    %v166 = vld [vmem:[#allocation8 + $0x140] sm:$0xff]
    %v167 = vld [vmem:[#allocation8 + $0x148] sm:$0xff]
    %v168 = vld [vmem:[#allocation8 + $0x150] sm:$0xff]
    %v169 = vld [vmem:[#allocation8 + $0x158] sm:$0xff]
    %v170 = vld [vmem:[#allocation8 + $0x160] sm:$0xff]
    %v171 = vld [vmem:[#allocation8 + $0x168] sm:$0xff]
    %v172 = vld [vmem:[#allocation8 + $0x170] sm:$0xff]
    %v173 = vld [vmem:[#allocation8 + $0x178] sm:$0xff]
    %v174 = vld [vmem:[#allocation8 + $0x180] sm:$0xff]
    %v175 = vld [vmem:[#allocation8 + $0x188] sm:$0xff]
    %v176 = vld [vmem:[#allocation8 + $0x190] sm:$0xff]
    %v177 = vld [vmem:[#allocation8 + $0x198] sm:$0xff]
    %v178 = vld [vmem:[#allocation8 + $0x1a0] sm:$0xff]
    %v179 = vld [vmem:[#allocation8 + $0x1a8] sm:$0xff]
    %v180 = vld [vmem:[#allocation8 + $0x1b0] sm:$0xff]
    %v181 = vld [vmem:[#allocation8 + $0x1b8] sm:$0xff]
    %v182 = vld [vmem:[#allocation8 + $0x1c0] sm:$0xff]
    %v183 = vld [vmem:[#allocation8 + $0x1c8] sm:$0xff]
    %v184 = vld [vmem:[#allocation8 + $0x1d0] sm:$0xff]
    %v185 = vld [vmem:[#allocation8 + $0x1d8] sm:$0xff]
    %v186 = vld [vmem:[#allocation8 + $0x1e0] sm:$0xff]
    %v187 = vld [vmem:[#allocation8 + $0x1e8] sm:$0xff]
    %v188 = vld [vmem:[#allocation8 + $0x1f0] sm:$0xff]
    %v189 = vld [vmem:[#allocation8 + $0x1f8] sm:$0xff]
    %v190 = vld [vmem:[#allocation8 + $0x200] sm:$0xff]
    %v191 = vld [vmem:[#allocation8 + $0x208] sm:$0xff]
    %v192 = vld [vmem:[#allocation8 + $0x210] sm:$0xff]
    %v193 = vld [vmem:[#allocation8 + $0x218] sm:$0xff]
    %v194 = vld [vmem:[#allocation8 + $0x220] sm:$0xff]
    %v195 = vld [vmem:[#allocation8 + $0x228] sm:$0xff]
    %v196 = vld [vmem:[#allocation8 + $0x230] sm:$0xff]
    %v197 = vld [vmem:[#allocation8 + $0x238] sm:$0xff]
    %v198 = vld [vmem:[#allocation8 + $0x240] sm:$0xff]
    %v199 = vld [vmem:[#allocation8 + $0x248] sm:$0xff]
    %v200 = vld [vmem:[#allocation8 + $0x250] sm:$0xff]
    %v201 = vld [vmem:[#allocation8 + $0x258] sm:$0xff]
    %v202 = vld [vmem:[#allocation8 + $0x260] sm:$0xff]
    %v203 = vld [vmem:[#allocation8 + $0x268] sm:$0xff]
    %v204 = vld [vmem:[#allocation8 + $0x270] sm:$0xff]
    %v205 = vld [vmem:[#allocation8 + $0x278] sm:$0xff]
    %v206 = vld [vmem:[#allocation8 + $0x280] sm:$0xff]
    %v207 = vld [vmem:[#allocation8 + $0x288] sm:$0xff]
    %v208 = vld [vmem:[#allocation8 + $0x290] sm:$0xff]
    %v209 = vld [vmem:[#allocation8 + $0x298] sm:$0xff]
    %v210 = vld [vmem:[#allocation8 + $0x2a0] sm:$0xff]
    %v211 = vld [vmem:[#allocation8 + $0x2a8] sm:$0xff]
    %v212 = vld [vmem:[#allocation8 + $0x2b0] sm:$0xff]
    %v213 = vld [vmem:[#allocation8 + $0x2b8] sm:$0xff]
    %v214 = vld [vmem:[#allocation8 + $0x2c0] sm:$0xff]
    %v215 = vld [vmem:[#allocation8 + $0x2c8] sm:$0xff]
    %v216 = vld [vmem:[#allocation8 + $0x2d0] sm:$0xff]
    %v217 = vld [vmem:[#allocation8 + $0x2d8] sm:$0xff]
    %v218 = vld [vmem:[#allocation8 + $0x2e0] sm:$0xff]
    %v219 = vld [vmem:[#allocation8 + $0x2e8] sm:$0xff]
    %v220 = vld [vmem:[#allocation8 + $0x2f0] sm:$0xff]
    %v221 = vld [vmem:[#allocation8 + $0x2f8] sm:$0xff]
    %vm222 = vcmask 523264
    %v224 = vsel %vm222, %v125, 0
    %226 = vmatprep.subr.mxu0 %v127
    %227 = vmatpush1.msra.mxu0 %v126
    %228 = vmatprep.subr.mxu0 %v131
    %229 = vmatpush1.msra.mxu0 %v130
    %230 = vmatprep.subr.mxu0 %v135
    %231 = vmatpush1.msra.mxu0 %v134
    %232 = vmatprep.subr.mxu0 %v139
    %233 = vmatpush1.msra.mxu0 %v138
    %234 = vmatprep.subr.mxu0 %v143
    %235 = vmatpush1.msra.mxu0 %v142
    %236 = vmatprep.subr.mxu0 %v147
    %237 = vmatpush1.msra.mxu0 %v146
    %238 = vmatprep.subr.mxu0 %v151
    %239 = vmatpush1.msra.mxu0 %v150
    %240 = vmatprep.subr.mxu0 %v155
    %241 = vmatpush1.msra.mxu0 %v154
    %242 = vmatprep.subr.mxu0 %v159
    %243 = vmatpush1.msra.mxu0 %v158
    %244 = vmatprep.subr.mxu0 %v163
    %245 = vmatpush1.msra.mxu0 %v162
    %246 = vmatprep.subr.mxu0 %v167
    %247 = vmatpush1.msra.mxu0 %v166
    %248 = vmatprep.subr.mxu0 %v171
    %249 = vmatpush1.msra.mxu0 %v170
    %250 = vmatprep.subr.mxu0 %v175
    %251 = vmatpush1.msra.mxu0 %v174
    %252 = vmatprep.subr.mxu0 %v179
    %253 = vmatpush1.msra.mxu0 %v178
    %254 = vmatprep.subr.mxu0 %v183
    %255 = vmatpush1.msra.mxu0 %v182
    %256 = vmatprep.subr.mxu0 %v187
    %257 = vmatpush1.msra.mxu0 %v186
    %258 = vmatprep.subr.mxu0 %v191
    %259 = vmatpush1.msra.mxu0 %v190
    %260 = vmatprep.subr.mxu0 %v195
    %261 = vmatpush1.msra.mxu0 %v194
    %262 = vmatprep.subr.mxu0 %v199
    %263 = vmatpush1.msra.mxu0 %v198
    %264 = vmatprep.subr.mxu0 %v203
    %265 = vmatpush1.msra.mxu0 %v202
    %266 = vmatprep.subr.mxu0 %v207
    %267 = vmatpush1.msra.mxu0 %v206
    %268 = vmatprep.subr.mxu0 %v211
    %269 = vmatpush1.msra.mxu0 %v210
    %270 = vmatprep.subr.mxu0 %v215
    %271 = vmatpush1.msra.mxu0 %v214
    %272 = vmatprep.subr.mxu0 %v219
    %273 = vmatpush1.msra.mxu0 %v218
    %274 = vmatprep.subr.mxu0 0.0
    %275 = vmatpush1.msra.mxu0 0.0
    %276 = vmatprep.subr.mxu0 0.0
    %277 = vmatpush1.msra.mxu0 0.0
    %278 = vmatprep.subr.mxu0 0.0
    %279 = vmatpush1.msra.mxu0 0.0
    %280 = vmatprep.subr.mxu0 0.0
    %281 = vmatpush1.msra.mxu0 0.0
    %282 = vmatprep.subr.mxu0 0.0
    %283 = vmatpush1.msra.mxu0 0.0
    %284 = vmatprep.subr.mxu0 0.0
    %285 = vmatpush1.msra.mxu0 0.0
    %286 = vmatprep.subr.mxu0 0.0
    %287 = vmatpush1.msra.mxu0 0.0
    %288 = vmatprep.subr.mxu0 0.0
    %289 = vmatpush1.msra.mxu0 0.0
    %290 = vmatprep.mubr.f32.mxu0 %v224
    %291 = vmatmul.mubr.f32.gmra.mrb[0].mxu0 %v124
    %v292 = vpop.f32.mrb[0].mxu0
    %v293 = vadd.f32 0.0, %v292
    %v294 = vpop.f32.mrb[0].mxu0
    %v295 = vadd.f32 0.0, %v294
    %296 = vdwg.mxu0
    %297 = vmatprep.subr.mxu0 %v129
    %298 = vmatpush1.msra.mxu0 %v128
    %299 = vmatprep.subr.mxu0 %v133
    %300 = vmatpush1.msra.mxu0 %v132
    %301 = vmatprep.subr.mxu0 %v137
    %302 = vmatpush1.msra.mxu0 %v136
    %303 = vmatprep.subr.mxu0 %v141
    %304 = vmatpush1.msra.mxu0 %v140
    %305 = vmatprep.subr.mxu0 %v145
    %306 = vmatpush1.msra.mxu0 %v144
    %307 = vmatprep.subr.mxu0 %v149
    %308 = vmatpush1.msra.mxu0 %v148
    %309 = vmatprep.subr.mxu0 %v153
    %310 = vmatpush1.msra.mxu0 %v152
    %311 = vmatprep.subr.mxu0 %v157
    %312 = vmatpush1.msra.mxu0 %v156
    %313 = vmatprep.subr.mxu0 %v161
    %314 = vmatpush1.msra.mxu0 %v160
    %315 = vmatprep.subr.mxu0 %v165
    %316 = vmatpush1.msra.mxu0 %v164
    %317 = vmatprep.subr.mxu0 %v169
    %318 = vmatpush1.msra.mxu0 %v168
    %319 = vmatprep.subr.mxu0 %v173
    %320 = vmatpush1.msra.mxu0 %v172
    %321 = vmatprep.subr.mxu0 %v177
    %322 = vmatpush1.msra.mxu0 %v176
    %323 = vmatprep.subr.mxu0 %v181
    %324 = vmatpush1.msra.mxu0 %v180
    %325 = vmatprep.subr.mxu0 %v185
    %326 = vmatpush1.msra.mxu0 %v184
    %327 = vmatprep.subr.mxu0 %v189
    %328 = vmatpush1.msra.mxu0 %v188
    %329 = vmatprep.subr.mxu0 %v193
    %330 = vmatpush1.msra.mxu0 %v192
    %331 = vmatprep.subr.mxu0 %v197
    %332 = vmatpush1.msra.mxu0 %v196
    %333 = vmatprep.subr.mxu0 %v201
    %334 = vmatpush1.msra.mxu0 %v200
    %335 = vmatprep.subr.mxu0 %v205
    %336 = vmatpush1.msra.mxu0 %v204
    %337 = vmatprep.subr.mxu0 %v209
    %338 = vmatpush1.msra.mxu0 %v208
    %339 = vmatprep.subr.mxu0 %v213
    %340 = vmatpush1.msra.mxu0 %v212
    %341 = vmatprep.subr.mxu0 %v217
    %342 = vmatpush1.msra.mxu0 %v216
    %343 = vmatprep.subr.mxu0 %v221
    %344 = vmatpush1.msra.mxu0 %v220
    %345 = vmatprep.subr.mxu0 0.0
    %346 = vmatpush1.msra.mxu0 0.0
    %347 = vmatprep.subr.mxu0 0.0
    %348 = vmatpush1.msra.mxu0 0.0
    %349 = vmatprep.subr.mxu0 0.0
    %350 = vmatpush1.msra.mxu0 0.0
    %351 = vmatprep.subr.mxu0 0.0
    %352 = vmatpush1.msra.mxu0 0.0
    %353 = vmatprep.subr.mxu0 0.0
    %354 = vmatpush1.msra.mxu0 0.0
    %355 = vmatprep.subr.mxu0 0.0
    %356 = vmatpush1.msra.mxu0 0.0
    %357 = vmatprep.subr.mxu0 0.0
    %358 = vmatpush1.msra.mxu0 0.0
    %359 = vmatprep.subr.mxu0 0.0
    %360 = vmatpush1.msra.mxu0 0.0
    %361 = vmatprep.mubr.f32.mxu0 %v224
    %362 = vmatmul.mubr.f32.gmra.mrb[0].mxu0 %v124
    %v363 = vpop.f32.mrb[0].mxu0
    %v364 = vadd.f32 0.0, %v363
    %v365 = vpop.f32.mrb[0].mxu0
    %v366 = vadd.f32 0.0, %v365
    %367 = vdwg.mxu0
    %v369 = vsel %vm222, %v91, 0
    %371 = vmatprep.subr.mxu0 %v93
    %372 = vmatpush1.msra.mxu0 %v92
    %373 = vmatprep.subr.mxu0 %v97
    %374 = vmatpush1.msra.mxu0 %v96
    %375 = vmatprep.subr.mxu0 %v101
    %376 = vmatpush1.msra.mxu0 %v100
    %377 = vmatprep.subr.mxu0 %v105
    %378 = vmatpush1.msra.mxu0 %v104
    %379 = vmatprep.subr.mxu0 %v109
    %380 = vmatpush1.msra.mxu0 %v108
    %381 = vmatprep.subr.mxu0 %v113
    %382 = vmatpush1.msra.mxu0 %v112
    %383 = vmatprep.subr.mxu0 %v117
    %384 = vmatpush1.msra.mxu0 %v116
    %385 = vmatprep.subr.mxu0 %v121
    %386 = vmatpush1.msra.mxu0 %v120
    %387 = vmatprep.subr.mxu0 0.0
    %388 = vmatpush1.msra.mxu0 0.0
    %389 = vmatprep.subr.mxu0 0.0
    %390 = vmatpush1.msra.mxu0 0.0
    %391 = vmatprep.subr.mxu0 0.0
    %392 = vmatpush1.msra.mxu0 0.0
    %393 = vmatprep.subr.mxu0 0.0
    %394 = vmatpush1.msra.mxu0 0.0
    %395 = vmatprep.subr.mxu0 0.0
    %396 = vmatpush1.msra.mxu0 0.0
    %397 = vmatprep.subr.mxu0 0.0
    %398 = vmatpush1.msra.mxu0 0.0
    %399 = vmatprep.subr.mxu0 0.0
    %400 = vmatpush1.msra.mxu0 0.0
    %401 = vmatprep.subr.mxu0 0.0
    %402 = vmatpush1.msra.mxu0 0.0
    %403 = vmatprep.subr.mxu0 0.0
    %404 = vmatpush1.msra.mxu0 0.0
    %405 = vmatprep.subr.mxu0 0.0
    %406 = vmatpush1.msra.mxu0 0.0
    %407 = vmatprep.subr.mxu0 0.0
    %408 = vmatpush1.msra.mxu0 0.0
    %409 = vmatprep.subr.mxu0 0.0
    %410 = vmatpush1.msra.mxu0 0.0
    %411 = vmatprep.subr.mxu0 0.0
    %412 = vmatpush1.msra.mxu0 0.0
    %413 = vmatprep.subr.mxu0 0.0
    %414 = vmatpush1.msra.mxu0 0.0
    %415 = vmatprep.subr.mxu0 0.0
    %416 = vmatpush1.msra.mxu0 0.0
    %417 = vmatprep.subr.mxu0 0.0
    %418 = vmatpush1.msra.mxu0 0.0
    %419 = vmatprep.subr.mxu0 0.0
    %420 = vmatpush1.msra.mxu0 0.0
    %421 = vmatprep.subr.mxu0 0.0
    %422 = vmatpush1.msra.mxu0 0.0
    %423 = vmatprep.subr.mxu0 0.0
    %424 = vmatpush1.msra.mxu0 0.0
    %425 = vmatprep.subr.mxu0 0.0
    %426 = vmatpush1.msra.mxu0 0.0
    %427 = vmatprep.subr.mxu0 0.0
    %428 = vmatpush1.msra.mxu0 0.0
    %429 = vmatprep.subr.mxu0 0.0
    %430 = vmatpush1.msra.mxu0 0.0
    %431 = vmatprep.subr.mxu0 0.0
    %432 = vmatpush1.msra.mxu0 0.0
    %433 = vmatprep.subr.mxu0 0.0
    %434 = vmatpush1.msra.mxu0 0.0
    %435 = vmatprep.mubr.f32.mxu0 0.0
    %436 = vmatmul.mubr.f32.gmra.mrb[0].mxu0 %v369
    %v437 = vpop.f32.mrb[0].mxu0
    %v438 = vadd.f32 %v293, %v437
    %v439 = vpop.f32.mrb[0].mxu0
    %v440 = vadd.f32 %v295, %v439
    %441 = vdwg.mxu0
    %442 = vmatprep.subr.mxu0 %v95
    %443 = vmatpush1.msra.mxu0 %v94
    %444 = vmatprep.subr.mxu0 %v99
    %445 = vmatpush1.msra.mxu0 %v98
    %446 = vmatprep.subr.mxu0 %v103
    %447 = vmatpush1.msra.mxu0 %v102
    %448 = vmatprep.subr.mxu0 %v107
    %449 = vmatpush1.msra.mxu0 %v106
    %450 = vmatprep.subr.mxu0 %v111
    %451 = vmatpush1.msra.mxu0 %v110
    %452 = vmatprep.subr.mxu0 %v115
    %453 = vmatpush1.msra.mxu0 %v114
    %454 = vmatprep.subr.mxu0 %v119
    %455 = vmatpush1.msra.mxu0 %v118
    %456 = vmatprep.subr.mxu0 %v123
    %457 = vmatpush1.msra.mxu0 %v122
    %458 = vmatprep.subr.mxu0 0.0
    %459 = vmatpush1.msra.mxu0 0.0
    %460 = vmatprep.subr.mxu0 0.0
    %461 = vmatpush1.msra.mxu0 0.0
    %462 = vmatprep.subr.mxu0 0.0
    %463 = vmatpush1.msra.mxu0 0.0
    %464 = vmatprep.subr.mxu0 0.0
    %465 = vmatpush1.msra.mxu0 0.0
    %466 = vmatprep.subr.mxu0 0.0
    %467 = vmatpush1.msra.mxu0 0.0
    %468 = vmatprep.subr.mxu0 0.0
    %469 = vmatpush1.msra.mxu0 0.0
    %470 = vmatprep.subr.mxu0 0.0
    %471 = vmatpush1.msra.mxu0 0.0
    %472 = vmatprep.subr.mxu0 0.0
    %473 = vmatpush1.msra.mxu0 0.0
    %474 = vmatprep.subr.mxu0 0.0
    %475 = vmatpush1.msra.mxu0 0.0
    %476 = vmatprep.subr.mxu0 0.0
    %477 = vmatpush1.msra.mxu0 0.0
    %478 = vmatprep.subr.mxu0 0.0
    %479 = vmatpush1.msra.mxu0 0.0
    %480 = vmatprep.subr.mxu0 0.0
    %481 = vmatpush1.msra.mxu0 0.0
    %482 = vmatprep.subr.mxu0 0.0
    %483 = vmatpush1.msra.mxu0 0.0
    %484 = vmatprep.subr.mxu0 0.0
    %485 = vmatpush1.msra.mxu0 0.0
    %486 = vmatprep.subr.mxu0 0.0
    %487 = vmatpush1.msra.mxu0 0.0
    %488 = vmatprep.subr.mxu0 0.0
    %489 = vmatpush1.msra.mxu0 0.0
    %490 = vmatprep.subr.mxu0 0.0
    %491 = vmatpush1.msra.mxu0 0.0
    %492 = vmatprep.subr.mxu0 0.0
    %493 = vmatpush1.msra.mxu0 0.0
    %494 = vmatprep.subr.mxu0 0.0
    %495 = vmatpush1.msra.mxu0 0.0
    %496 = vmatprep.subr.mxu0 0.0
    %497 = vmatpush1.msra.mxu0 0.0
    %498 = vmatprep.subr.mxu0 0.0
    %499 = vmatpush1.msra.mxu0 0.0
    %500 = vmatprep.subr.mxu0 0.0
    %501 = vmatpush1.msra.mxu0 0.0
    %502 = vmatprep.subr.mxu0 0.0
    %503 = vmatpush1.msra.mxu0 0.0
    %504 = vmatprep.subr.mxu0 0.0
    %505 = vmatpush1.msra.mxu0 0.0
    %506 = vmatprep.mubr.f32.mxu0 0.0
    %507 = vmatmul.mubr.f32.gmra.mrb[0].mxu0 %v369
    %v508 = vpop.f32.mrb[0].mxu0
    %v509 = vadd.f32 %v364, %v508
    %v510 = vpop.f32.mrb[0].mxu0
    %v511 = vadd.f32 %v366, %v510
    %512 = vdwg.mxu0
    %v513 = vld [vmem:[%s4] sm:$0xf]
    %v515 = vlaneseq
    %v516 = vshrl.u32 %v515, 7
    %v517 = vsub.s32 0, %v516
    %v518 = vrot.slane %v513, %v517
    %v519 = vlaneseq
    %v520 = vshrl.u32 %v519, 7
    %v521 = vsub.s32 1, %v520
    %v522 = vrot.slane %v513, %v521
    %v523 = vlaneseq
    %v524 = vshrl.u32 %v523, 7
    %v525 = vsub.s32 2, %v524
    %v526 = vrot.slane %v513, %v525
    %v527 = vlaneseq
    %v528 = vshrl.u32 %v527, 7
    %v529 = vsub.s32 3, %v528
    %v530 = vrot.slane %v513, %v529
    %v535 = vadd.f32 %v438, %v518
    %v536 = vadd.f32 %v440, %v522
    %v537 = vadd.f32 %v509, %v526
    %v538 = vadd.f32 %v511, %v530
    %v539 = vmax.f32 %v535, 0.0
    %v540 = vmax.f32 %v536, 0.0
    %v541 = vmax.f32 %v537, 0.0
    %v542 = vmax.f32 %v538, 0.0
    %v543 = vld [vmem:[#allocation10] sm:$0xff]
    %v544 = vld [vmem:[#allocation10 + $0x8] sm:$0xff]
    %v545 = vld [vmem:[#allocation10 + $0x10] sm:$0xff]
    %v546 = vld [vmem:[#allocation10 + $0x18] sm:$0xff]
    %v547 = vld [vmem:[#allocation10 + $0x20] sm:$0xff]
    %v548 = vld [vmem:[#allocation10 + $0x28] sm:$0xff]
    %v549 = vld [vmem:[#allocation10 + $0x30] sm:$0xff]
    %v550 = vld [vmem:[#allocation10 + $0x38] sm:$0xff]
    %v551 = vld [vmem:[#allocation10 + $0x40] sm:$0xff]
    %v552 = vld [vmem:[#allocation10 + $0x48] sm:$0xff]
    %v553 = vld [vmem:[#allocation10 + $0x50] sm:$0xff]
    %v554 = vld [vmem:[#allocation10 + $0x58] sm:$0xff]
    %v555 = vld [vmem:[#allocation10 + $0x60] sm:$0xff]
    %v556 = vld [vmem:[#allocation10 + $0x68] sm:$0xff]
    %v557 = vld [vmem:[#allocation10 + $0x70] sm:$0xff]
    %v558 = vld [vmem:[#allocation10 + $0x78] sm:$0xff]
    %v559 = vld [vmem:[#allocation10 + $0x80] sm:$0xff]
    %v560 = vld [vmem:[#allocation10 + $0x88] sm:$0xff]
    %v561 = vld [vmem:[#allocation10 + $0x90] sm:$0xff]
    %v562 = vld [vmem:[#allocation10 + $0x98] sm:$0xff]
    %v563 = vld [vmem:[#allocation10 + $0xa0] sm:$0xff]
    %v564 = vld [vmem:[#allocation10 + $0xa8] sm:$0xff]
    %v565 = vld [vmem:[#allocation10 + $0xb0] sm:$0xff]
    %v566 = vld [vmem:[#allocation10 + $0xb8] sm:$0xff]
    %v567 = vld [vmem:[#allocation10 + $0xc0] sm:$0xff]
    %v568 = vld [vmem:[#allocation10 + $0xc8] sm:$0xff]
    %v569 = vld [vmem:[#allocation10 + $0xd0] sm:$0xff]
    %v570 = vld [vmem:[#allocation10 + $0xd8] sm:$0xff]
    %v571 = vld [vmem:[#allocation10 + $0xe0] sm:$0xff]
    %v572 = vld [vmem:[#allocation10 + $0xe8] sm:$0xff]
    %v573 = vld [vmem:[#allocation10 + $0xf0] sm:$0xff]
    %v574 = vld [vmem:[#allocation10 + $0xf8] sm:$0xff]
    %v575 = vld [vmem:[#allocation10 + $0x100] sm:$0xff]
    %v576 = vld [vmem:[#allocation10 + $0x108] sm:$0xff]
    %v577 = vld [vmem:[#allocation10 + $0x110] sm:$0xff]
    %v578 = vld [vmem:[#allocation10 + $0x118] sm:$0xff]
    %v579 = vld [vmem:[#allocation10 + $0x120] sm:$0xff]
    %v580 = vld [vmem:[#allocation10 + $0x128] sm:$0xff]
    %v581 = vld [vmem:[#allocation10 + $0x130] sm:$0xff]
    %v582 = vld [vmem:[#allocation10 + $0x138] sm:$0xff]
    %v583 = vld [vmem:[#allocation10 + $0x140] sm:$0xff]
    %v584 = vld [vmem:[#allocation10 + $0x148] sm:$0xff]
    %v585 = vld [vmem:[#allocation10 + $0x150] sm:$0xff]
    %v586 = vld [vmem:[#allocation10 + $0x158] sm:$0xff]
    %v587 = vld [vmem:[#allocation10 + $0x160] sm:$0xff]
    %v588 = vld [vmem:[#allocation10 + $0x168] sm:$0xff]
    %v589 = vld [vmem:[#allocation10 + $0x170] sm:$0xff]
    %v590 = vld [vmem:[#allocation10 + $0x178] sm:$0xff]
    %v591 = vld [vmem:[#allocation10 + $0x180] sm:$0xff]
    %v592 = vld [vmem:[#allocation10 + $0x188] sm:$0xff]
    %v593 = vld [vmem:[#allocation10 + $0x190] sm:$0xff]
    %v594 = vld [vmem:[#allocation10 + $0x198] sm:$0xff]
    %v595 = vld [vmem:[#allocation10 + $0x1a0] sm:$0xff]
    %v596 = vld [vmem:[#allocation10 + $0x1a8] sm:$0xff]
    %v597 = vld [vmem:[#allocation10 + $0x1b0] sm:$0xff]
    %v598 = vld [vmem:[#allocation10 + $0x1b8] sm:$0xff]
    %v599 = vld [vmem:[#allocation10 + $0x1c0] sm:$0xff]
    %v600 = vld [vmem:[#allocation10 + $0x1c8] sm:$0xff]
    %v601 = vld [vmem:[#allocation10 + $0x1d0] sm:$0xff]
    %v602 = vld [vmem:[#allocation10 + $0x1d8] sm:$0xff]
    %v603 = vld [vmem:[#allocation10 + $0x1e0] sm:$0xff]
    %v604 = vld [vmem:[#allocation10 + $0x1e8] sm:$0xff]
    %v605 = vld [vmem:[#allocation10 + $0x1f0] sm:$0xff]
    %v606 = vld [vmem:[#allocation10 + $0x1f8] sm:$0xff]
    %v607 = vld [vmem:[#allocation10 + $0x200] sm:$0xff]
    %v608 = vld [vmem:[#allocation10 + $0x208] sm:$0xff]
    %v609 = vld [vmem:[#allocation10 + $0x210] sm:$0xff]
    %v610 = vld [vmem:[#allocation10 + $0x218] sm:$0xff]
    %v611 = vld [vmem:[#allocation10 + $0x220] sm:$0xff]
    %v612 = vld [vmem:[#allocation10 + $0x228] sm:$0xff]
    %v613 = vld [vmem:[#allocation10 + $0x230] sm:$0xff]
    %v614 = vld [vmem:[#allocation10 + $0x238] sm:$0xff]
    %v615 = vld [vmem:[#allocation10 + $0x240] sm:$0xff]
    %v616 = vld [vmem:[#allocation10 + $0x248] sm:$0xff]
    %v617 = vld [vmem:[#allocation10 + $0x250] sm:$0xff]
    %v618 = vld [vmem:[#allocation10 + $0x258] sm:$0xff]
    %v619 = vld [vmem:[#allocation10 + $0x260] sm:$0xff]
    %v620 = vld [vmem:[#allocation10 + $0x268] sm:$0xff]
    %v621 = vld [vmem:[#allocation10 + $0x270] sm:$0xff]
    %v622 = vld [vmem:[#allocation10 + $0x278] sm:$0xff]
    %v623 = vld [vmem:[#allocation10 + $0x280] sm:$0xff]
    %v624 = vld [vmem:[#allocation10 + $0x288] sm:$0xff]
    %v625 = vld [vmem:[#allocation10 + $0x290] sm:$0xff]
    %v626 = vld [vmem:[#allocation10 + $0x298] sm:$0xff]
    %v627 = vld [vmem:[#allocation10 + $0x2a0] sm:$0xff]
    %v628 = vld [vmem:[#allocation10 + $0x2a8] sm:$0xff]
    %v629 = vld [vmem:[#allocation10 + $0x2b0] sm:$0xff]
    %v630 = vld [vmem:[#allocation10 + $0x2b8] sm:$0xff]
    %v631 = vld [vmem:[#allocation10 + $0x2c0] sm:$0xff]
    %v632 = vld [vmem:[#allocation10 + $0x2c8] sm:$0xff]
    %v633 = vld [vmem:[#allocation10 + $0x2d0] sm:$0xff]
    %v634 = vld [vmem:[#allocation10 + $0x2d8] sm:$0xff]
    %v635 = vld [vmem:[#allocation10 + $0x2e0] sm:$0xff]
    %v636 = vld [vmem:[#allocation10 + $0x2e8] sm:$0xff]
    %v637 = vld [vmem:[#allocation10 + $0x2f0] sm:$0xff]
    %v638 = vld [vmem:[#allocation10 + $0x2f8] sm:$0xff]
    %v639 = vld [vmem:[#allocation10 + $0x300] sm:$0xff]
    %v640 = vld [vmem:[#allocation10 + $0x308] sm:$0xff]
    %v641 = vld [vmem:[#allocation10 + $0x310] sm:$0xff]
    %v642 = vld [vmem:[#allocation10 + $0x318] sm:$0xff]
    %v643 = vld [vmem:[#allocation10 + $0x320] sm:$0xff]
    %v644 = vld [vmem:[#allocation10 + $0x328] sm:$0xff]
    %v645 = vld [vmem:[#allocation10 + $0x330] sm:$0xff]
    %v646 = vld [vmem:[#allocation10 + $0x338] sm:$0xff]
    %v647 = vld [vmem:[#allocation10 + $0x340] sm:$0xff]
    %v648 = vld [vmem:[#allocation10 + $0x348] sm:$0xff]
    %v649 = vld [vmem:[#allocation10 + $0x350] sm:$0xff]
    %v650 = vld [vmem:[#allocation10 + $0x358] sm:$0xff]
    %v651 = vld [vmem:[#allocation10 + $0x360] sm:$0xff]
    %v652 = vld [vmem:[#allocation10 + $0x368] sm:$0xff]
    %v653 = vld [vmem:[#allocation10 + $0x370] sm:$0xff]
    %v654 = vld [vmem:[#allocation10 + $0x378] sm:$0xff]
    %v655 = vld [vmem:[#allocation10 + $0x380] sm:$0xff]
    %v656 = vld [vmem:[#allocation10 + $0x388] sm:$0xff]
    %v657 = vld [vmem:[#allocation10 + $0x390] sm:$0xff]
    %v658 = vld [vmem:[#allocation10 + $0x398] sm:$0xff]
    %v659 = vld [vmem:[#allocation10 + $0x3a0] sm:$0xff]
    %v660 = vld [vmem:[#allocation10 + $0x3a8] sm:$0xff]
    %v661 = vld [vmem:[#allocation10 + $0x3b0] sm:$0xff]
    %v662 = vld [vmem:[#allocation10 + $0x3b8] sm:$0xff]
    %v663 = vld [vmem:[#allocation10 + $0x3c0] sm:$0xff]
    %v664 = vld [vmem:[#allocation10 + $0x3c8] sm:$0xff]
    %v665 = vld [vmem:[#allocation10 + $0x3d0] sm:$0xff]
    %v666 = vld [vmem:[#allocation10 + $0x3d8] sm:$0xff]
    %v667 = vld [vmem:[#allocation10 + $0x3e0] sm:$0xff]
    %v668 = vld [vmem:[#allocation10 + $0x3e8] sm:$0xff]
    %v669 = vld [vmem:[#allocation10 + $0x3f0] sm:$0xff]
    %v670 = vld [vmem:[#allocation10 + $0x3f8] sm:$0xff]
    %v671 = vld [vmem:[%s6] sm:$0x3]
    %v673 = vlaneseq
    %v674 = vshrl.u32 %v673, 7
    %v675 = vsub.s32 0, %v674
    %v676 = vrot.slane %v671, %v675
    %v677 = vlaneseq
    %v678 = vshrl.u32 %v677, 7
    %v679 = vsub.s32 1, %v678
    %v680 = vrot.slane %v671, %v679
    %683 = vmatprep.subr.mxu0 %v544
    %684 = vmatpush1.msra.mxu0 %v543
    %685 = vmatprep.subr.mxu0 %v546
    %686 = vmatpush1.msra.mxu0 %v545
    %687 = vmatprep.subr.mxu0 %v548
    %688 = vmatpush1.msra.mxu0 %v547
    %689 = vmatprep.subr.mxu0 %v550
    %690 = vmatpush1.msra.mxu0 %v549
    %691 = vmatprep.subr.mxu0 %v552
    %692 = vmatpush1.msra.mxu0 %v551
    %693 = vmatprep.subr.mxu0 %v554
    %694 = vmatpush1.msra.mxu0 %v553
    %695 = vmatprep.subr.mxu0 %v556
    %696 = vmatpush1.msra.mxu0 %v555
    %697 = vmatprep.subr.mxu0 %v558
    %698 = vmatpush1.msra.mxu0 %v557
    %699 = vmatprep.subr.mxu0 %v560
    %700 = vmatpush1.msra.mxu0 %v559
    %701 = vmatprep.subr.mxu0 %v562
    %702 = vmatpush1.msra.mxu0 %v561
    %703 = vmatprep.subr.mxu0 %v564
    %704 = vmatpush1.msra.mxu0 %v563
    %705 = vmatprep.subr.mxu0 %v566
    %706 = vmatpush1.msra.mxu0 %v565
    %707 = vmatprep.subr.mxu0 %v568
    %708 = vmatpush1.msra.mxu0 %v567
    %709 = vmatprep.subr.mxu0 %v570
    %710 = vmatpush1.msra.mxu0 %v569
    %711 = vmatprep.subr.mxu0 %v572
    %712 = vmatpush1.msra.mxu0 %v571
    %713 = vmatprep.subr.mxu0 %v574
    %714 = vmatpush1.msra.mxu0 %v573
    %715 = vmatprep.subr.mxu0 %v576
    %716 = vmatpush1.msra.mxu0 %v575
    %717 = vmatprep.subr.mxu0 %v578
    %718 = vmatpush1.msra.mxu0 %v577
    %719 = vmatprep.subr.mxu0 %v580
    %720 = vmatpush1.msra.mxu0 %v579
    %721 = vmatprep.subr.mxu0 %v582
    %722 = vmatpush1.msra.mxu0 %v581
    %723 = vmatprep.subr.mxu0 %v584
    %724 = vmatpush1.msra.mxu0 %v583
    %725 = vmatprep.subr.mxu0 %v586
    %726 = vmatpush1.msra.mxu0 %v585
    %727 = vmatprep.subr.mxu0 %v588
    %728 = vmatpush1.msra.mxu0 %v587
    %729 = vmatprep.subr.mxu0 %v590
    %730 = vmatpush1.msra.mxu0 %v589
    %731 = vmatprep.subr.mxu0 %v592
    %732 = vmatpush1.msra.mxu0 %v591
    %733 = vmatprep.subr.mxu0 %v594
    %734 = vmatpush1.msra.mxu0 %v593
    %735 = vmatprep.subr.mxu0 %v596
    %736 = vmatpush1.msra.mxu0 %v595
    %737 = vmatprep.subr.mxu0 %v598
    %738 = vmatpush1.msra.mxu0 %v597
    %739 = vmatprep.subr.mxu0 %v600
    %740 = vmatpush1.msra.mxu0 %v599
    %741 = vmatprep.subr.mxu0 %v602
    %742 = vmatpush1.msra.mxu0 %v601
    %743 = vmatprep.subr.mxu0 %v604
    %744 = vmatpush1.msra.mxu0 %v603
    %745 = vmatprep.subr.mxu0 %v606
    %746 = vmatpush1.msra.mxu0 %v605
    %747 = vmatprep.mubr.f32.mxu0 %v540
    %748 = vmatmul.mubr.f32.gmra.mrb[0].mxu0 %v539
    %v749 = vpop.f32.mrb[0].mxu0
    %v750 = vadd.f32 %v676, %v749
    %v751 = vpop.f32.mrb[0].mxu0
    %v752 = vadd.f32 %v680, %v751
    %753 = vdwg.mxu0
    %754 = vmatprep.subr.mxu0 %v608
    %755 = vmatpush1.msra.mxu0 %v607
    %756 = vmatprep.subr.mxu0 %v610
    %757 = vmatpush1.msra.mxu0 %v609
    %758 = vmatprep.subr.mxu0 %v612
    %759 = vmatpush1.msra.mxu0 %v611
    %760 = vmatprep.subr.mxu0 %v614
    %761 = vmatpush1.msra.mxu0 %v613
    %762 = vmatprep.subr.mxu0 %v616
    %763 = vmatpush1.msra.mxu0 %v615
    %764 = vmatprep.subr.mxu0 %v618
    %765 = vmatpush1.msra.mxu0 %v617
    %766 = vmatprep.subr.mxu0 %v620
    %767 = vmatpush1.msra.mxu0 %v619
    %768 = vmatprep.subr.mxu0 %v622
    %769 = vmatpush1.msra.mxu0 %v621
    %770 = vmatprep.subr.mxu0 %v624
    %771 = vmatpush1.msra.mxu0 %v623
    %772 = vmatprep.subr.mxu0 %v626
    %773 = vmatpush1.msra.mxu0 %v625
    %774 = vmatprep.subr.mxu0 %v628
    %775 = vmatpush1.msra.mxu0 %v627
    %776 = vmatprep.subr.mxu0 %v630
    %777 = vmatpush1.msra.mxu0 %v629
    %778 = vmatprep.subr.mxu0 %v632
    %779 = vmatpush1.msra.mxu0 %v631
    %780 = vmatprep.subr.mxu0 %v634
    %781 = vmatpush1.msra.mxu0 %v633
    %782 = vmatprep.subr.mxu0 %v636
    %783 = vmatpush1.msra.mxu0 %v635
    %784 = vmatprep.subr.mxu0 %v638
    %785 = vmatpush1.msra.mxu0 %v637
    %786 = vmatprep.subr.mxu0 %v640
    %787 = vmatpush1.msra.mxu0 %v639
    %788 = vmatprep.subr.mxu0 %v642
    %789 = vmatpush1.msra.mxu0 %v641
    %790 = vmatprep.subr.mxu0 %v644
    %791 = vmatpush1.msra.mxu0 %v643
    %792 = vmatprep.subr.mxu0 %v646
    %793 = vmatpush1.msra.mxu0 %v645
    %794 = vmatprep.subr.mxu0 %v648
    %795 = vmatpush1.msra.mxu0 %v647
    %796 = vmatprep.subr.mxu0 %v650
    %797 = vmatpush1.msra.mxu0 %v649
    %798 = vmatprep.subr.mxu0 %v652
    %799 = vmatpush1.msra.mxu0 %v651
    %800 = vmatprep.subr.mxu0 %v654
    %801 = vmatpush1.msra.mxu0 %v653
    %802 = vmatprep.subr.mxu0 %v656
    %803 = vmatpush1.msra.mxu0 %v655
    %804 = vmatprep.subr.mxu0 %v658
    %805 = vmatpush1.msra.mxu0 %v657
    %806 = vmatprep.subr.mxu0 %v660
    %807 = vmatpush1.msra.mxu0 %v659
    %808 = vmatprep.subr.mxu0 %v662
    %809 = vmatpush1.msra.mxu0 %v661
    %810 = vmatprep.subr.mxu0 %v664
    %811 = vmatpush1.msra.mxu0 %v663
    %812 = vmatprep.subr.mxu0 %v666
    %813 = vmatpush1.msra.mxu0 %v665
    %814 = vmatprep.subr.mxu0 %v668
    %815 = vmatpush1.msra.mxu0 %v667
    %816 = vmatprep.subr.mxu0 %v670
    %817 = vmatpush1.msra.mxu0 %v669
    %818 = vmatprep.mubr.f32.mxu0 %v542
    %819 = vmatmul.mubr.f32.gmra.mrb[0].mxu0 %v541
    %v820 = vpop.f32.mrb[0].mxu0
    %v821 = vadd.f32 %v750, %v820
    %v822 = vpop.f32.mrb[0].mxu0
    %v823 = vadd.f32 %v752, %v822
    %824 = vdwg.mxu0
    %825 = vst [vmem:[#allocation11] sm:$0xff] %v821
    %826 = vst [vmem:[#allocation11 + $0x8] sm:$0xff] %v823
    // Predicated region
    $region50: #{tpu_custom_call.1} parent=1 // pred_check
      _
    $region51: #{tpu_custom_call.1} parent=1 // pred_check_branch
      %828 = sbr.rel (0) target = $region53
    $region52: #{tpu_custom_call.1} parent=1 // pred_region
      %s830 = ssub.s32 256, 256
      %831 = vsyncadd [#allocation4], %s830
      %s833 = sshll.u32 [#allocation11], 4
      %s834 = int_to_ptr.vmem [resolvable:$true] %s833
      %836 = dma.vmem_to_hbm [thread:$0]  %s834, 256, %s7, [#allocation4]
    $region53: #{tpu_custom_call.1} parent=1 // pred_fallthru
      _
    // Predicated region
    $region54: #{tpu_custom_call.1} parent=1 // pred_check
      _
    $region55: #{tpu_custom_call.1} parent=1 // pred_check_branch
      %838 = sbr.rel (0) target = $region57
    $region56: #{tpu_custom_call.1} parent=1 // pred_region
      %839 = dma.done [#allocation4], 256
    $region57: #{tpu_custom_call.1} parent=1 // pred_fallthru
      _
    %840 = vsyncpa [#allocation3], 1
    %841 = vsyncpa [#allocation6], 1
    %842 = vsyncpa [#allocation9], 1
    %843 = vsyncpa [#allocation4], 1

</llo_original>
